<compile_context>
chip_gen: v7x
topology: tpu7x:2x2x1
jax: 0.10.0
libtpu: 0.0.40
codegen_flags: <defaults>
</compile_context>

<pallas_src>
import functools

import jax
import jax.numpy as jnp
from jax.experimental import pallas as pl
from jax.experimental.pallas import tpu as pltpu


def _eeg_depth_attention_kernel(x_ref, s_ref, st_ref, band_ref, bias_ref, o_ref,
                                *, tb, d, c, w):
    # x_ref:    (TB, D, C*W) VMEM  lane-dense input block
    # s_ref:    (C*W, W)     VMEM  0/1 channel-pool matrix (constant across grid)
    # st_ref:   (W, C*W)     VMEM  0/1 channel-broadcast matrix (its transpose)
    # band_ref: (D, D)       VMEM  depth-conv band matrix, pre-scaled by 1/C
    # bias_ref: (1,)         SMEM  conv bias
    # o_ref:    (TB, D, C*W) VMEM  output block
    s_mat = s_ref[...]
    st_mat = st_ref[...]
    band = band_ref[...]
    bias = bias_ref[0]
    cgain = float(c)

    for i in range(tb):                                   # static unroll; tb capped small
        xi = x_ref[i]                                                      # (D, C*W)
        # Channel sum on the MXU (the 1/C of the mean lives in `band`).
        pooled = jnp.dot(xi, s_mat, preferred_element_type=jnp.float32)    # (D, W) f32
        # Depth conv Conv2d(1,1,(k,1),pad=(k//2,0)) as one (D, D) band matmul.
        y = jnp.dot(band, pooled, preferred_element_type=jnp.float32) + bias
        # Softmax over depth (axis 0); the * C factor folds into the normalization.
        mx = jnp.max(y, axis=0, keepdims=True)
        e = jnp.exp(y - mx)
        denom = jnp.sum(e, axis=0, keepdims=True)
        scale = (e * (cgain / denom)).astype(xi.dtype)                     # (D, W)
        # Channel broadcast via the transposed 0/1 matmul, then one lane-dense
        # multiply + store in the input dtype.
        wide = jnp.dot(scale, st_mat, preferred_element_type=jnp.float32)  # (D, C*W)
        o_ref[i] = wide.astype(o_ref.dtype) * xi


def eeg_depth_attention(x, conv_weight, conv_bias, *, block_bytes=6 << 20, max_tb=16):
    """x: (N, D, C, W); conv_weight: (1, 1, k, 1); conv_bias: (1,).

    Assumes the adaptive pool target width equals the input W (as in LMDA usage).
    """
    n, d, c, w = x.shape
    k = conv_weight.shape[2]
    pad = k // 2
    cw = c * w

    # Band matrix for the depth conv: band[i, j] = taps[j - i + pad] / C.
    taps = conv_weight.reshape(k).astype(jnp.float32)
    rows = jnp.arange(d)[:, None]
    cols = jnp.arange(d)[None, :]
    tap_idx = cols - rows + pad
    band = jnp.where((tap_idx >= 0) & (tap_idx < k),
                     taps[jnp.clip(tap_idx, 0, k - 1)],
                     jnp.float32(0.0)) / float(c)
    band = band.astype(jnp.float32)
    bias = conv_bias.reshape(1).astype(jnp.float32)

    # 0/1 selection matrix (and its transpose) for the MXU pool / broadcast.
    eye = jnp.eye(w, dtype=x.dtype)
    s_mat = jnp.tile(eye, (c, 1))       # (C*W, W): pooled = x_row @ s_mat
    st_mat = jnp.tile(eye, (1, c))      # (W, C*W): wide   = scale @ st_mat

    # Batch tile: largest divisor of N whose block fits the budget, while keeping
    # the grid at >= 2 steps so both v7x TensorCores get work.
    per_sample = d * cw * x.dtype.itemsize
    tb = 1
    for cand in range(1, n + 1):
        if n % cand:
            continue
        if cand > 1 and (cand > max_tb or cand * per_sample > block_bytes):
            continue
        if cand > 1 and n // cand < 2:
            continue
        tb = cand
    # TODO(synk): add an intra-sample W tile (second grid axis) for the case where a
    # single sample's D*C*W exceeds the VMEM block budget.

    x3 = x.reshape(n, d, cw)            # free contiguous reshape -> lane-dense last dim

    kernel = functools.partial(_eeg_depth_attention_kernel, tb=tb, d=d, c=c, w=w)

    grid_spec = pltpu.PrefetchScalarGridSpec(
        num_scalar_prefetch=0,
        grid=(n // tb,),
        in_specs=[
            pl.BlockSpec((tb, d, cw), lambda b: (b, 0, 0)),            # x block
            pl.BlockSpec((cw, w), lambda b: (0, 0)),                   # S (fetched once)
            pl.BlockSpec((w, cw), lambda b: (0, 0)),                   # S^T (fetched once)
            pl.BlockSpec((d, d), lambda b: (0, 0)),                    # band (fetched once)
            pl.BlockSpec(memory_space=pltpu.MemorySpace.SMEM),         # bias
        ],
        out_specs=pl.BlockSpec((tb, d, cw), lambda b: (b, 0, 0)),
    )
    out3 = pl.pallas_call(
        kernel,
        out_shape=jax.ShapeDtypeStruct((n, d, cw), x.dtype),
        grid_spec=grid_spec,
        compiler_params=pltpu.CompilerParams(
            dimension_semantics=("parallel",),
            vmem_limit_bytes=48 * 1024 * 1024,   # > v5e/v6e scoped defaults, < v7x physical
        ),
    )(x3, s_mat, st_mat, band, bias)
    return out3.reshape(n, d, c, w)


def _reference(x, conv_weight, conv_bias):
    """Pure-JAX reference mirroring the PyTorch forward."""
    n, d, c, w = x.shape
    k = conv_weight.shape[2]
    pad = k // 2
    x_pool = jnp.mean(x, axis=2, keepdims=True)               # (N, D, 1, W)
    x_t = jnp.transpose(x_pool, (0, 2, 1, 3))                 # (N, 1, D, W)
    y = jax.lax.conv_general_dilated(
        x_t, conv_weight,
        window_strides=(1, 1),
        padding=((pad, pad), (0, 0)),
        dimension_numbers=("NCHW", "OIHW", "NCHW"),
    ) + conv_bias.reshape(1, 1, 1, 1)
    y = jax.nn.softmax(y, axis=-2)                            # softmax over D
    y = jnp.transpose(y, (0, 2, 1, 3))                        # (N, D, 1, W)
    return y * c * x


if __name__ == "__main__":
    key = jax.random.PRNGKey(0)
    kx, kw, kb = jax.random.split(key, 3)

    # EEGDepthAttention(W=16, C=16, k=7) applied to x of shape (N=2, D=4, C=16, W=16).
    N, D, C, W, K = 2, 4, 16, 16, 7
    x = jax.random.normal(kx, (N, D, C, W), dtype=jnp.float32)
    conv_weight = jax.random.normal(kw, (1, 1, K, 1), dtype=jnp.float32) * 0.1
    conv_bias = jax.random.normal(kb, (1,), dtype=jnp.float32) * 0.1

    out = eeg_depth_attention(x, conv_weight, conv_bias)
    out = jax.block_until_ready(out)

    ref = _reference(x, conv_weight, conv_bias)
    assert out.shape == ref.shape and out.dtype == ref.dtype
    max_err = float(jnp.max(jnp.abs(out - ref)))
    # Tolerance absorbs MXU f32 pass behavior on the 0/1 selection matmuls.
    assert jnp.allclose(out, ref, rtol=5e-3, atol=5e-3), max_err
    print("KERNEL_OK")
</pallas_src>

<mosaic_0001>
module attributes {stable_mosaic.version = 11 : i64} {
  func.func @_eeg_depth_attention_kernel(%arg0: i32, %arg1: memref<1x4x256xf32, #tpu.memory_space<vmem>>, %arg2: memref<256x16xf32, #tpu.memory_space<vmem>>, %arg3: memref<16x256xf32, #tpu.memory_space<vmem>>, %arg4: memref<4x4xf32, #tpu.memory_space<vmem>>, %arg5: memref<1xf32, #tpu.memory_space<smem>>, %arg6: memref<1x4x256xf32, #tpu.memory_space<vmem>>) attributes {dimension_semantics = [#tpu.dimension_semantics<parallel>], iteration_bounds = array<i64: 2>, scalar_prefetch = 0 : i64, scratch_operands = 0 : i64, tpu.core_type = #tpu.core_type<tc>, window_params = [{transform_indices = @transform_0, window_bounds = array<i64: 1, 4, 256>}, {pipeline_mode = #tpu.pipeline_mode<synchronous>, transform_indices = @transform_1, window_bounds = array<i64: 256, 16>}, {pipeline_mode = #tpu.pipeline_mode<synchronous>, transform_indices = @transform_2, window_bounds = array<i64: 16, 256>}, {pipeline_mode = #tpu.pipeline_mode<synchronous>, transform_indices = @transform_3, window_bounds = array<i64: 4, 4>}, {transform_indices = @transform_4, window_bounds = array<i64: 1>}, {transform_indices = @transform_5, window_bounds = array<i64: 1, 4, 256>}]} {
    %c0 = arith.constant 0 : index
    %c0_0 = arith.constant 0 : index
    %0 = vector.load %arg2[%c0, %c0_0] : memref<256x16xf32, #tpu.memory_space<vmem>>, vector<256x16xf32>
    %c0_1 = arith.constant 0 : index
    %c0_2 = arith.constant 0 : index
    %1 = vector.load %arg3[%c0_1, %c0_2] : memref<16x256xf32, #tpu.memory_space<vmem>>, vector<16x256xf32>
    %c0_3 = arith.constant 0 : index
    %c0_4 = arith.constant 0 : index
    %2 = vector.load %arg4[%c0_3, %c0_4] : memref<4x4xf32, #tpu.memory_space<vmem>>, vector<4x4xf32>
    %c0_5 = arith.constant 0 : index
    %3 = memref.load %arg5[%c0_5] : memref<1xf32, #tpu.memory_space<smem>>
    %c0_6 = arith.constant 0 : index
    %c0_7 = arith.constant 0 : index
    %c0_8 = arith.constant 0 : index
    %4 = vector.load %arg1[%c0_6, %c0_7, %c0_8] : memref<1x4x256xf32, #tpu.memory_space<vmem>>, vector<1x4x256xf32>
    %5 = vector.shape_cast %4 : vector<1x4x256xf32> to vector<4x256xf32>
    %cst = arith.constant dense<0.000000e+00> : vector<4x16xf32>
    %6 = tpu.matmul %5, %0, %cst {dimension_numbers = #tpu.dot_dimension_numbers<[1], [0], [0], [1], [0, 0, 1, 1], [], []>} : vector<4x256xf32>, vector<256x16xf32>, vector<4x16xf32> -> vector<4x16xf32>
    %cst_9 = arith.constant dense<0.000000e+00> : vector<4x16xf32>
    %7 = tpu.matmul %2, %6, %cst_9 {dimension_numbers = #tpu.dot_dimension_numbers<[1], [0], [0], [1], [0, 0, 1, 1], [], []>} : vector<4x4xf32>, vector<4x16xf32>, vector<4x16xf32> -> vector<4x16xf32>
    %8 = vector.broadcast %3 : f32 to vector<4x16xf32>
    %9 = arith.addf %7, %8 : vector<4x16xf32>
    %cst_10 = arith.constant dense<0xFF800000> : vector<16xf32>
    %10 = vector.multi_reduction <maximumf>, %9, %cst_10 [0] : vector<4x16xf32> to vector<16xf32>
    %11 = vector.shape_cast %10 : vector<16xf32> to vector<1x16xf32>
    %12 = vector.broadcast %11 : vector<1x16xf32> to vector<4x16xf32>
    %13 = arith.subf %9, %12 : vector<4x16xf32>
    %14 = math.exp %13 : vector<4x16xf32>
    %cst_11 = arith.constant dense<0.000000e+00> : vector<16xf32>
    %15 = vector.multi_reduction <add>, %14, %cst_11 [0] : vector<4x16xf32> to vector<16xf32>
    %16 = vector.shape_cast %15 : vector<16xf32> to vector<1x16xf32>
    %cst_12 = arith.constant 1.600000e+01 : f32
    %17 = vector.broadcast %cst_12 : f32 to vector<1x16xf32>
    %18 = arith.divf %17, %16 : vector<1x16xf32>
    %19 = vector.broadcast %18 : vector<1x16xf32> to vector<4x16xf32>
    %20 = arith.mulf %14, %19 : vector<4x16xf32>
    %cst_13 = arith.constant dense<0.000000e+00> : vector<4x256xf32>
    %21 = tpu.matmul %20, %1, %cst_13 {dimension_numbers = #tpu.dot_dimension_numbers<[1], [0], [0], [1], [0, 0, 1, 1], [], []>} : vector<4x16xf32>, vector<16x256xf32>, vector<4x256xf32> -> vector<4x256xf32>
    %22 = arith.mulf %21, %5 : vector<4x256xf32>
    %c0_14 = arith.constant 0 : index
    %c0_15 = arith.constant 0 : index
    %c0_16 = arith.constant 0 : index
    %23 = vector.load %arg6[%c0_14, %c0_15, %c0_16] : memref<1x4x256xf32, #tpu.memory_space<vmem>>, vector<1x4x256xf32>
    %24 = vector.shape_cast %23 : vector<1x4x256xf32> to vector<4x256xf32>
    %25 = vector.shape_cast %22 : vector<4x256xf32> to vector<1x4x256xf32>
    tpu.vector_store %arg6[%c0_14, %c0_15, %c0_16], %25 {strides = array<i32>} : memref<1x4x256xf32, #tpu.memory_space<vmem>>, vector<1x4x256xf32>,
    return
  }
  func.func @transform_0(%arg0: i32) -> (i32, i32, i32) {
    %c0_i32 = arith.constant 0 : i32
    %c0_i32_0 = arith.constant 0 : i32
    %c0_i32_1 = arith.constant 0 : i32
    return %arg0, %c0_i32, %c0_i32_0 : i32, i32, i32
  }
  func.func @transform_1(%arg0: i32) -> (i32, i32) {
    %c0_i32 = arith.constant 0 : i32
    %c0_i32_0 = arith.constant 0 : i32
    %c0_i32_1 = arith.constant 0 : i32
    return %c0_i32, %c0_i32_0 : i32, i32
  }
  func.func @transform_2(%arg0: i32) -> (i32, i32) {
    %c0_i32 = arith.constant 0 : i32
    %c0_i32_0 = arith.constant 0 : i32
    %c0_i32_1 = arith.constant 0 : i32
    return %c0_i32, %c0_i32_0 : i32, i32
  }
  func.func @transform_3(%arg0: i32) -> (i32, i32) {
    %c0_i32 = arith.constant 0 : i32
    %c0_i32_0 = arith.constant 0 : i32
    %c0_i32_1 = arith.constant 0 : i32
    return %c0_i32, %c0_i32_0 : i32, i32
  }
  func.func @transform_4(%arg0: i32) -> i32 {
    %c0_i32 = arith.constant 0 : i32
    %c0_i32_0 = arith.constant 0 : i32
    return %c0_i32 : i32
  }
  func.func @transform_5(%arg0: i32) -> (i32, i32, i32) {
    %c0_i32 = arith.constant 0 : i32
    %c0_i32_0 = arith.constant 0 : i32
    %c0_i32_1 = arith.constant 0 : i32
    return %arg0, %c0_i32, %c0_i32_0 : i32, i32, i32
  }
}

</mosaic_0001>

<llo_original>
// kernel: tpu_custom_call.1
$region0: #{tpu_custom_call.1}
  #allocation0 [shape = 'u32[]', space=smem, size = 0x4, offset = 0x4, fixed_abs, tag = 'smem constant byte address 0x4 - core index']
  #allocation1 [shape = 'u32[144,128]{1,0:T(1,128)}', space=vmem, size = 0x12000, scoped, tag = 'internal scratch']
  #allocation2 [shape = 'f32[1]{0:T(128)S(6)}', space=smem, size = 0x200, scoped, tag = 'scoped memory for tpu_custom_call.1']
  %s0 = inlined_call_operand.vmem [shape: f32[2,4,256], index: 0, kind: input, shape index: {}]
  %s1 = inlined_call_operand.vmem [shape: f32[256,16], index: 1, kind: input, shape index: {}]
  %s2 = inlined_call_operand.vmem [shape: f32[16,256], index: 2, kind: input, shape index: {}]
  %s3 = inlined_call_operand.vmem [shape: f32[4,4], index: 3, kind: input, shape index: {}]
  %s4 = inlined_call_operand.<no memory space> [shape: f32[1], index: 4, kind: input, shape index: {}]
  %s5 = inlined_call_operand.hbm [shape: f32[2,4,256], index: 5, kind: output, shape index: {}]
  %s6 = sld [smem:[#allocation0]]
  $region53: #{tpu_custom_call.1} parent=0
    _
  %s8 = ssub.s32 1, %s6
  %s9 = scalar_select 0, %s8, %s6
  %10 = sst [smem:[#allocation2]] %s4
  $region1: #{tpu_custom_call.1} parent=0
    #allocation3 [shape = 'u8[8192]{0}', space=vmem, size = 0x2000, scoped, tag = 'output window, operand 0']
    #allocation4 [shape = 's32[2]{0}', space=sflag, size = 0x8, scoped, tag = 'scoped memory for tpu_custom_call.1']
    %11 = vsyncpa [#allocation4], 0
    %s12 = scalar_lea.sflag [#allocation4], 1
    %13 = vsyncpa %s12, 0
    loop: start=0, step=1, limit=4
    $region2: #{tpu_custom_call.1} parent=1 // loop_pre_header
      _
    $region3: #{tpu_custom_call.1} parent=1 // loop_header
      %s15 = sphi 0, %s19
      %p16 = scmp.ge.s32.totalorder %s15, 4
      %s25 = sphi 0, %s27
      %s28 = sphi 0, %s25
      %s29 = sphi 0, %s28
      %s45 = sphi 0, %s29
      %s49 = sphi 0, %s49
      %s51 = sphi 0, %s49
      %s52 = sphi 0, %s51
      %s66 = sphi 0, %s52
      %s70 = sphi 0, %s70
      %s72 = sphi 0, %s70
      %s73 = sphi 0, %s72
      %s87 = sphi 0, %s73
      %s91 = sphi 0, %s91
      %s93 = sphi 0, %s91
      %s94 = sphi 0, %s93
      %s108 = sphi 0, %s94
      %s112 = sphi 0, %s112
      %s114 = sphi 0, %s112
      %s115 = sphi 0, %s114
      %s129 = sphi 0, %s115
      %s135 = sphi 0, %s137
      %s138 = sphi 0, %s135
      %s139 = sphi 0, %s138
      %s155 = sphi 0, %s139
    $region4: #{tpu_custom_call.1} parent=1 // loop_header_branch
      %18 = sbr.rel (%p16) target = $region8
    $region5: #{tpu_custom_call.1} parent=1 // loop_body
      %s20 = ssub.s32 %s15, 1
      %s21 = ssub.s32 %s15, 2
      %s22 = sadd.s32 %s15, 1
      %s23 = ssub.s32 %s15, %s22
      %p24 = scmp.eq.s32.totalorder %s23, 0
      %s26 = sadd.s32 %s25, 1
      %s27 = scalar_select %p24, %s25, %s26
      %p30 = pneg %p24
      %p31 = scmp.eq.s32.totalorder %s15, 1
      %p32 = por %p30, %p31
      %p33 = scmp.ne.s32.totalorder %s25, %s28
      %p34 = scmp.eq.s32.totalorder %s15, 0
      %p35 = por %p33, %p34
      %p36 = scmp.ne.s32.totalorder %s25, %s28
      %p37 = scmp.eq.s32.totalorder %s20, 1
      %p38 = por %p36, %p37
      %p39 = scmp.ne.s32.totalorder %s28, %s29
      %p40 = scmp.eq.s32.totalorder %s20, 0
      %p41 = por %p39, %p40
      %p42 = scmp.ne.s32.totalorder %s28, %s29
      %p43 = scmp.eq.s32.totalorder %s21, 1
      %p44 = por %p42, %p43
      %p46 = scmp.ne.s32.totalorder %s29, %s45
      %p47 = scmp.eq.s32.totalorder %s21, 0
      %p48 = por %p46, %p47
      %s50 = sadd.s32 %s49, 1
      %p53 = scmp.eq.s32.totalorder %s15, 1
      %p54 = scmp.ne.s32.totalorder %s49, %s51
      %p55 = scmp.eq.s32.totalorder %s15, 0
      %p56 = por %p54, %p55
      %p57 = scmp.ne.s32.totalorder %s49, %s51
      %p58 = scmp.eq.s32.totalorder %s20, 1
      %p59 = por %p57, %p58
      %p60 = scmp.ne.s32.totalorder %s51, %s52
      %p61 = scmp.eq.s32.totalorder %s20, 0
      %p62 = por %p60, %p61
      %p63 = scmp.ne.s32.totalorder %s51, %s52
      %p64 = scmp.eq.s32.totalorder %s21, 1
      %p65 = por %p63, %p64
      %p67 = scmp.ne.s32.totalorder %s52, %s66
      %p68 = scmp.eq.s32.totalorder %s21, 0
      %p69 = por %p67, %p68
      %s71 = sadd.s32 %s70, 1
      %p74 = scmp.eq.s32.totalorder %s15, 1
      %p75 = scmp.ne.s32.totalorder %s70, %s72
      %p76 = scmp.eq.s32.totalorder %s15, 0
      %p77 = por %p75, %p76
      %p78 = scmp.ne.s32.totalorder %s70, %s72
      %p79 = scmp.eq.s32.totalorder %s20, 1
      %p80 = por %p78, %p79
      %p81 = scmp.ne.s32.totalorder %s72, %s73
      %p82 = scmp.eq.s32.totalorder %s20, 0
      %p83 = por %p81, %p82
      %p84 = scmp.ne.s32.totalorder %s72, %s73
      %p85 = scmp.eq.s32.totalorder %s21, 1
      %p86 = por %p84, %p85
      %p88 = scmp.ne.s32.totalorder %s73, %s87
      %p89 = scmp.eq.s32.totalorder %s21, 0
      %p90 = por %p88, %p89
      %s92 = sadd.s32 %s91, 1
      %p95 = scmp.eq.s32.totalorder %s15, 1
      %p96 = scmp.ne.s32.totalorder %s91, %s93
      %p97 = scmp.eq.s32.totalorder %s15, 0
      %p98 = por %p96, %p97
      %p99 = scmp.ne.s32.totalorder %s91, %s93
      %p100 = scmp.eq.s32.totalorder %s20, 1
      %p101 = por %p99, %p100
      %p102 = scmp.ne.s32.totalorder %s93, %s94
      %p103 = scmp.eq.s32.totalorder %s20, 0
      %p104 = por %p102, %p103
      %p105 = scmp.ne.s32.totalorder %s93, %s94
      %p106 = scmp.eq.s32.totalorder %s21, 1
      %p107 = por %p105, %p106
      %p109 = scmp.ne.s32.totalorder %s94, %s108
      %p110 = scmp.eq.s32.totalorder %s21, 0
      %p111 = por %p109, %p110
      %s113 = sadd.s32 %s112, 1
      %p116 = scmp.eq.s32.totalorder %s15, 1
      %p117 = scmp.ne.s32.totalorder %s112, %s114
      %p118 = scmp.eq.s32.totalorder %s15, 0
      %p119 = por %p117, %p118
      %p120 = scmp.ne.s32.totalorder %s112, %s114
      %p121 = scmp.eq.s32.totalorder %s20, 1
      %p122 = por %p120, %p121
      %p123 = scmp.ne.s32.totalorder %s114, %s115
      %p124 = scmp.eq.s32.totalorder %s20, 0
      %p125 = por %p123, %p124
      %p126 = scmp.ne.s32.totalorder %s114, %s115
      %p127 = scmp.eq.s32.totalorder %s21, 1
      %p128 = por %p126, %p127
      %p130 = scmp.ne.s32.totalorder %s115, %s129
      %p131 = scmp.eq.s32.totalorder %s21, 0
      %p132 = por %p130, %p131
      %s133 = ssub.s32 %s15, %s22
      %p134 = scmp.eq.s32.totalorder %s133, 0
      %s136 = sadd.s32 %s135, 1
      %s137 = scalar_select %p134, %s135, %s136
      %p140 = pneg %p134
      %p141 = scmp.eq.s32.totalorder %s15, 1
      %p142 = por %p140, %p141
      %p143 = scmp.ne.s32.totalorder %s135, %s138
      %p144 = scmp.eq.s32.totalorder %s15, 0
      %p145 = por %p143, %p144
      %p146 = scmp.ne.s32.totalorder %s135, %s138
      %p147 = scmp.eq.s32.totalorder %s20, 1
      %p148 = por %p146, %p147
      %p149 = scmp.ne.s32.totalorder %s138, %s139
      %p150 = scmp.eq.s32.totalorder %s20, 0
      %p151 = por %p149, %p150
      %p152 = scmp.ne.s32.totalorder %s138, %s139
      %p153 = scmp.eq.s32.totalorder %s21, 1
      %p154 = por %p152, %p153
      %p156 = scmp.ne.s32.totalorder %s139, %s155
      %p157 = scmp.eq.s32.totalorder %s21, 0
      %p158 = por %p156, %p157
      %p159 = scmp.le.s32.totalorder 1, %s15
      %p160 = scmp.lt.s32.totalorder %s15, 3
      %p161 = pnand %p159, %p160
      %p162 = pneg %p161
      // Predicated region
      $region9: #{tpu_custom_call.1} parent=5 // pred_check
        _
      $region10: #{tpu_custom_call.1} parent=5 // pred_check_branch
        %164 = sbr.rel (%p161) target = $region12
      $region11: #{tpu_custom_call.1} parent=5 // pred_region
        %s165 = ssub.s32 %s15, 1
        // Predicated region
        $region13: #{tpu_custom_call.1} parent=11 // pred_check
          %p166 = pneg %p62
        $region14: #{tpu_custom_call.1} parent=11 // pred_check_branch
          %168 = sbr.rel (%p166) target = $region16
        $region15: #{tpu_custom_call.1} parent=11 // pred_region
          _
        $region16: #{tpu_custom_call.1} parent=11 // pred_fallthru
          _
        // Predicated region
        $region17: #{tpu_custom_call.1} parent=11 // pred_check
          %p169 = pneg %p83
        $region18: #{tpu_custom_call.1} parent=11 // pred_check_branch
          %171 = sbr.rel (%p169) target = $region20
        $region19: #{tpu_custom_call.1} parent=11 // pred_region
          _
        $region20: #{tpu_custom_call.1} parent=11 // pred_fallthru
          _
        // Predicated region
        $region21: #{tpu_custom_call.1} parent=11 // pred_check
          %p172 = pneg %p104
        $region22: #{tpu_custom_call.1} parent=11 // pred_check_branch
          %174 = sbr.rel (%p172) target = $region24
        $region23: #{tpu_custom_call.1} parent=11 // pred_region
          _
        $region24: #{tpu_custom_call.1} parent=11 // pred_fallthru
          _
        // Predicated region
        $region25: #{tpu_custom_call.1} parent=11 // pred_check
          %p175 = pneg %p125
        $region26: #{tpu_custom_call.1} parent=11 // pred_check_branch
          %177 = sbr.rel (%p175) target = $region28
        $region27: #{tpu_custom_call.1} parent=11 // pred_region
          _
        $region28: #{tpu_custom_call.1} parent=11 // pred_fallthru
          _
      $region12: #{tpu_custom_call.1} parent=5 // pred_fallthru
        _
      %p178 = scmp.lt.s32.totalorder %s15, 2
      // Predicated region
      $region29: #{tpu_custom_call.1} parent=5 // pred_check
        %p179 = pneg %p178
      $region30: #{tpu_custom_call.1} parent=5 // pred_check_branch
        %181 = sbr.rel (%p179) target = $region32
      $region31: #{tpu_custom_call.1} parent=5 // pred_region
        // Predicated region
        $region33: #{tpu_custom_call.1} parent=31 // pred_check
          %p182 = pneg %p35
        $region34: #{tpu_custom_call.1} parent=31 // pred_check_branch
          %184 = sbr.rel (%p182) target = $region36
        $region35: #{tpu_custom_call.1} parent=31 // pred_region
          %p185 = scmp.lt.s32.totalorder %s15, 1
          %s186 = scalar_select %p185, %s15, 1
          %s187 = smul.addr %s186, 2
          %s188 = smul.addr %s187, 4
          %s189 = scalar_lea.vmem %s0, %s188
        $region36: #{tpu_custom_call.1} parent=31 // pred_fallthru
          _
      $region32: #{tpu_custom_call.1} parent=5 // pred_fallthru
        _
      %p190 = scmp.le.s32.totalorder 1, %s15
      %p191 = scmp.lt.s32.totalorder %s15, 3
      %p192 = pnand %p190, %p191
      %p193 = pneg %p192
      // Predicated region
      $region37: #{tpu_custom_call.1} parent=5 // pred_check
        _
      $region38: #{tpu_custom_call.1} parent=5 // pred_check_branch
        %195 = sbr.rel (%p192) target = $region40
      $region39: #{tpu_custom_call.1} parent=5 // pred_region
        %s196 = ssub.s32 %s15, 1
        %p197 = scmp.lt.s32.totalorder %s20, 1
        %s198 = scalar_select %p197, %s20, 1
        %s199 = smul.addr %s198, 2
        %s200 = smul.addr %s199, 4
        %s201 = scalar_lea.vmem %s0, %s200
        %p202 = pneg %p41
        %p203 = pneg %p38
        %p204 = pneg %p62
        %p205 = pneg %p59
        %p206 = pneg %p83
        %p207 = pneg %p80
        %p208 = pneg %p104
        %p209 = pneg %p101
        %p210 = pneg %p125
        %p211 = pneg %p122
        %p212 = pneg %p151
        %p213 = pneg %p148
        %s214 = sand.u32 %s138, 1
        %s215 = scalar_lea.sflag [#allocation4], %s214
        %s216 = sand.u32 %s138, 1
        %s217 = smul.addr %s216, 8
        %s218 = scalar_lea.vmem [#allocation3], %s217
        %p219 = scmp.lt.s32.totalorder %s20, 1
        %s220 = scalar_select %p219, %s20, 1
        %s221 = smul.addr %s220, 2
        %s222 = smul.addr %s221, 4
        %s223 = scalar_lea.vmem %s0, %s222
        %v224 = vld [vmem:[%s1] sm:$0xff]
        %v225 = vld [vmem:[%s1 + $0x8] sm:$0xff]
        %v226 = vld [vmem:[%s1 + $0x10] sm:$0xff]
        %v227 = vld [vmem:[%s1 + $0x18] sm:$0xff]
        %v228 = vld [vmem:[%s1 + $0x20] sm:$0xff]
        %v229 = vld [vmem:[%s1 + $0x28] sm:$0xff]
        %v230 = vld [vmem:[%s1 + $0x30] sm:$0xff]
        %v231 = vld [vmem:[%s1 + $0x38] sm:$0xff]
        %v232 = vld [vmem:[%s1 + $0x40] sm:$0xff]
        %v233 = vld [vmem:[%s1 + $0x48] sm:$0xff]
        %v234 = vld [vmem:[%s1 + $0x50] sm:$0xff]
        %v235 = vld [vmem:[%s1 + $0x58] sm:$0xff]
        %v236 = vld [vmem:[%s1 + $0x60] sm:$0xff]
        %v237 = vld [vmem:[%s1 + $0x68] sm:$0xff]
        %v238 = vld [vmem:[%s1 + $0x70] sm:$0xff]
        %v239 = vld [vmem:[%s1 + $0x78] sm:$0xff]
        %v240 = vld [vmem:[%s1 + $0x80] sm:$0xff]
        %v241 = vld [vmem:[%s1 + $0x88] sm:$0xff]
        %v242 = vld [vmem:[%s1 + $0x90] sm:$0xff]
        %v243 = vld [vmem:[%s1 + $0x98] sm:$0xff]
        %v244 = vld [vmem:[%s1 + $0xa0] sm:$0xff]
        %v245 = vld [vmem:[%s1 + $0xa8] sm:$0xff]
        %v246 = vld [vmem:[%s1 + $0xb0] sm:$0xff]
        %v247 = vld [vmem:[%s1 + $0xb8] sm:$0xff]
        %v248 = vld [vmem:[%s1 + $0xc0] sm:$0xff]
        %v249 = vld [vmem:[%s1 + $0xc8] sm:$0xff]
        %v250 = vld [vmem:[%s1 + $0xd0] sm:$0xff]
        %v251 = vld [vmem:[%s1 + $0xd8] sm:$0xff]
        %v252 = vld [vmem:[%s1 + $0xe0] sm:$0xff]
        %v253 = vld [vmem:[%s1 + $0xe8] sm:$0xff]
        %v254 = vld [vmem:[%s1 + $0xf0] sm:$0xff]
        %v255 = vld [vmem:[%s1 + $0xf8] sm:$0xff]
        %v256 = vld [vmem:[%s2] sm:$0xff]
        %v257 = vld [vmem:[%s2 + $0x8] sm:$0xff]
        %v258 = vld [vmem:[%s2 + $0x10] sm:$0xff]
        %v259 = vld [vmem:[%s2 + $0x18] sm:$0xff]
        %v260 = vld [vmem:[%s3] sm:$0xf]
        %s261 = sld [smem:[#allocation2]]
        %v262 = vld [vmem:[%s223] sm:$0xff]
        %v264 = vcombine.high %v262, %v262
        %266 = vmatprep.subr.mxu0 0.0
        %267 = vmatpush1.msra.mxu0 %v224
        %268 = vmatprep.subr.mxu0 0.0
        %269 = vmatpush1.msra.mxu0 %v225
        %270 = vmatprep.subr.mxu0 0.0
        %271 = vmatpush1.msra.mxu0 %v226
        %272 = vmatprep.subr.mxu0 0.0
        %273 = vmatpush1.msra.mxu0 %v227
        %274 = vmatprep.subr.mxu0 0.0
        %275 = vmatpush1.msra.mxu0 %v228
        %276 = vmatprep.subr.mxu0 0.0
        %277 = vmatpush1.msra.mxu0 %v229
        %278 = vmatprep.subr.mxu0 0.0
        %279 = vmatpush1.msra.mxu0 %v230
        %280 = vmatprep.subr.mxu0 0.0
        %281 = vmatpush1.msra.mxu0 %v231
        %282 = vmatprep.subr.mxu0 0.0
        %283 = vmatpush1.msra.mxu0 %v232
        %284 = vmatprep.subr.mxu0 0.0
        %285 = vmatpush1.msra.mxu0 %v233
        %286 = vmatprep.subr.mxu0 0.0
        %287 = vmatpush1.msra.mxu0 %v234
        %288 = vmatprep.subr.mxu0 0.0
        %289 = vmatpush1.msra.mxu0 %v235
        %290 = vmatprep.subr.mxu0 0.0
        %291 = vmatpush1.msra.mxu0 %v236
        %292 = vmatprep.subr.mxu0 0.0
        %293 = vmatpush1.msra.mxu0 %v237
        %294 = vmatprep.subr.mxu0 0.0
        %295 = vmatpush1.msra.mxu0 %v238
        %296 = vmatprep.subr.mxu0 0.0
        %297 = vmatpush1.msra.mxu0 %v239
        %298 = vmatprep.subr.mxu0 0.0
        %299 = vmatpush1.msra.mxu0 %v240
        %300 = vmatprep.subr.mxu0 0.0
        %301 = vmatpush1.msra.mxu0 %v241
        %302 = vmatprep.subr.mxu0 0.0
        %303 = vmatpush1.msra.mxu0 %v242
        %304 = vmatprep.subr.mxu0 0.0
        %305 = vmatpush1.msra.mxu0 %v243
        %306 = vmatprep.subr.mxu0 0.0
        %307 = vmatpush1.msra.mxu0 %v244
        %308 = vmatprep.subr.mxu0 0.0
        %309 = vmatpush1.msra.mxu0 %v245
        %310 = vmatprep.subr.mxu0 0.0
        %311 = vmatpush1.msra.mxu0 %v246
        %312 = vmatprep.subr.mxu0 0.0
        %313 = vmatpush1.msra.mxu0 %v247
        %314 = vmatprep.subr.mxu0 0.0
        %315 = vmatpush1.msra.mxu0 %v248
        %316 = vmatprep.subr.mxu0 0.0
        %317 = vmatpush1.msra.mxu0 %v249
        %318 = vmatprep.subr.mxu0 0.0
        %319 = vmatpush1.msra.mxu0 %v250
        %320 = vmatprep.subr.mxu0 0.0
        %321 = vmatpush1.msra.mxu0 %v251
        %322 = vmatprep.subr.mxu0 0.0
        %323 = vmatpush1.msra.mxu0 %v252
        %324 = vmatprep.subr.mxu0 0.0
        %325 = vmatpush1.msra.mxu0 %v253
        %326 = vmatprep.subr.mxu0 0.0
        %327 = vmatpush1.msra.mxu0 %v254
        %328 = vmatprep.subr.mxu0 0.0
        %329 = vmatpush1.msra.mxu0 %v255
        %330 = vmatprep.mubr.f32.mxu0 %v264
        %331 = vmatmul.mubr.f32.gmra.mrb[0].mxu0 %v262
        %v332 = vpop.f32.mrb[0].mxu0
        %v333 = vadd.f32 0.0, %v332
        %v334 = vpop.f32.mrb[0].mxu0
        %335 = vdwg.mxu0
        %v336 = vstv %s261
        %vm337 = vcmask 31744
        %v339 = vsel %vm337, %v260, 0
        %vm341 = vcmask 1043456
        %v343 = vsel %vm341, %v333, 0
        %345 = vmatprep.subr.mxu0 0.0
        %346 = vmatpush1.msra.mxu0 %v343
        %347 = vmatprep.subr.mxu0 0.0
        %348 = vmatpush1.msra.mxu0 0.0
        %349 = vmatprep.subr.mxu0 0.0
        %350 = vmatpush1.msra.mxu0 0.0
        %351 = vmatprep.subr.mxu0 0.0
        %352 = vmatpush1.msra.mxu0 0.0
        %353 = vmatprep.subr.mxu0 0.0
        %354 = vmatpush1.msra.mxu0 0.0
        %355 = vmatprep.subr.mxu0 0.0
        %356 = vmatpush1.msra.mxu0 0.0
        %357 = vmatprep.subr.mxu0 0.0
        %358 = vmatpush1.msra.mxu0 0.0
        %359 = vmatprep.subr.mxu0 0.0
        %360 = vmatpush1.msra.mxu0 0.0
        %361 = vmatprep.subr.mxu0 0.0
        %362 = vmatpush1.msra.mxu0 0.0
        %363 = vmatprep.subr.mxu0 0.0
        %364 = vmatpush1.msra.mxu0 0.0
        %365 = vmatprep.subr.mxu0 0.0
        %366 = vmatpush1.msra.mxu0 0.0
        %367 = vmatprep.subr.mxu0 0.0
        %368 = vmatpush1.msra.mxu0 0.0
        %369 = vmatprep.subr.mxu0 0.0
        %370 = vmatpush1.msra.mxu0 0.0
        %371 = vmatprep.subr.mxu0 0.0
        %372 = vmatpush1.msra.mxu0 0.0
        %373 = vmatprep.subr.mxu0 0.0
        %374 = vmatpush1.msra.mxu0 0.0
        %375 = vmatprep.subr.mxu0 0.0
        %376 = vmatpush1.msra.mxu0 0.0
        %377 = vmatprep.subr.mxu0 0.0
        %378 = vmatpush1.msra.mxu0 0.0
        %379 = vmatprep.subr.mxu0 0.0
        %380 = vmatpush1.msra.mxu0 0.0
        %381 = vmatprep.subr.mxu0 0.0
        %382 = vmatpush1.msra.mxu0 0.0
        %383 = vmatprep.subr.mxu0 0.0
        %384 = vmatpush1.msra.mxu0 0.0
        %385 = vmatprep.subr.mxu0 0.0
        %386 = vmatpush1.msra.mxu0 0.0
        %387 = vmatprep.subr.mxu0 0.0
        %388 = vmatpush1.msra.mxu0 0.0
        %389 = vmatprep.subr.mxu0 0.0
        %390 = vmatpush1.msra.mxu0 0.0
        %391 = vmatprep.subr.mxu0 0.0
        %392 = vmatpush1.msra.mxu0 0.0
        %393 = vmatprep.subr.mxu0 0.0
        %394 = vmatpush1.msra.mxu0 0.0
        %395 = vmatprep.subr.mxu0 0.0
        %396 = vmatpush1.msra.mxu0 0.0
        %397 = vmatprep.subr.mxu0 0.0
        %398 = vmatpush1.msra.mxu0 0.0
        %399 = vmatprep.subr.mxu0 0.0
        %400 = vmatpush1.msra.mxu0 0.0
        %401 = vmatprep.subr.mxu0 0.0
        %402 = vmatpush1.msra.mxu0 0.0
        %403 = vmatprep.subr.mxu0 0.0
        %404 = vmatpush1.msra.mxu0 0.0
        %405 = vmatprep.subr.mxu0 0.0
        %406 = vmatpush1.msra.mxu0 0.0
        %407 = vmatprep.subr.mxu0 0.0
        %408 = vmatpush1.msra.mxu0 0.0
        %409 = vmatprep.mubr.f32.mxu0 0.0
        %410 = vmatmul.mubr.f32.gmra.mrb[0].mxu0 %v339
        %v411 = vpop.f32.mrb[0].mxu0
        %v412 = vadd.f32 %v336, %v411
        %v413 = vpop.f32.mrb[0].mxu0
        %414 = vdwg.mxu0
        %vm415 = vcmask 125952
        %v416 = vsel %vm415, %v412, -inf
        %v417 = vrot.slane %v416, 4
        %v418 = vmax.f32 %v416, %v417
        %v419 = vrot.slane %v418, 2
        %v420 = vmax.f32 %v418, %v419
        %v421 = vrot.slane %v420, 1
        %v422 = vmax.f32 %v420, %v421
        %v423 = vsub.f32 %v412, %v422
        %v424 = vmul.f32 %v423, 1.442695
        %v425 = vpow.pop %v424
        %v426 = vsel %vm415, %v425, 0.0
        %v427 = vrot.slane %v426, 4
        %v428 = vadd.f32 %v426, %v427
        %v429 = vrot.slane %v428, 2
        %v430 = vadd.f32 %v428, %v429
        %v431 = vrot.slane %v430, 1
        %v432 = vadd.f32 %v430, %v431
        %v433 = vrcp.pop %v432
        %v434 = vmul.f32 16.0, %v433
        %v435 = vmul.f32 %v425, %v434
        %vm436 = vcmask 130048
        %v438 = vsel %vm436, %v435, 0
        %440 = vmatprep.subr.mxu0 %v257
        %441 = vmatpush1.msra.mxu0 %v256
        %442 = vmatprep.subr.mxu0 %v259
        %443 = vmatpush1.msra.mxu0 %v258
        %444 = vmatprep.subr.mxu0 0.0
        %445 = vmatpush1.msra.mxu0 0.0
        %446 = vmatprep.subr.mxu0 0.0
        %447 = vmatpush1.msra.mxu0 0.0
        %448 = vmatprep.subr.mxu0 0.0
        %449 = vmatpush1.msra.mxu0 0.0
        %450 = vmatprep.subr.mxu0 0.0
        %451 = vmatpush1.msra.mxu0 0.0
        %452 = vmatprep.subr.mxu0 0.0
        %453 = vmatpush1.msra.mxu0 0.0
        %454 = vmatprep.subr.mxu0 0.0
        %455 = vmatpush1.msra.mxu0 0.0
        %456 = vmatprep.subr.mxu0 0.0
        %457 = vmatpush1.msra.mxu0 0.0
        %458 = vmatprep.subr.mxu0 0.0
        %459 = vmatpush1.msra.mxu0 0.0
        %460 = vmatprep.subr.mxu0 0.0
        %461 = vmatpush1.msra.mxu0 0.0
        %462 = vmatprep.subr.mxu0 0.0
        %463 = vmatpush1.msra.mxu0 0.0
        %464 = vmatprep.subr.mxu0 0.0
        %465 = vmatpush1.msra.mxu0 0.0
        %466 = vmatprep.subr.mxu0 0.0
        %467 = vmatpush1.msra.mxu0 0.0
        %468 = vmatprep.subr.mxu0 0.0
        %469 = vmatpush1.msra.mxu0 0.0
        %470 = vmatprep.subr.mxu0 0.0
        %471 = vmatpush1.msra.mxu0 0.0
        %472 = vmatprep.subr.mxu0 0.0
        %473 = vmatpush1.msra.mxu0 0.0
        %474 = vmatprep.subr.mxu0 0.0
        %475 = vmatpush1.msra.mxu0 0.0
        %476 = vmatprep.subr.mxu0 0.0
        %477 = vmatpush1.msra.mxu0 0.0
        %478 = vmatprep.subr.mxu0 0.0
        %479 = vmatpush1.msra.mxu0 0.0
        %480 = vmatprep.subr.mxu0 0.0
        %481 = vmatpush1.msra.mxu0 0.0
        %482 = vmatprep.subr.mxu0 0.0
        %483 = vmatpush1.msra.mxu0 0.0
        %484 = vmatprep.subr.mxu0 0.0
        %485 = vmatpush1.msra.mxu0 0.0
        %486 = vmatprep.subr.mxu0 0.0
        %487 = vmatpush1.msra.mxu0 0.0
        %488 = vmatprep.subr.mxu0 0.0
        %489 = vmatpush1.msra.mxu0 0.0
        %490 = vmatprep.subr.mxu0 0.0
        %491 = vmatpush1.msra.mxu0 0.0
        %492 = vmatprep.subr.mxu0 0.0
        %493 = vmatpush1.msra.mxu0 0.0
        %494 = vmatprep.subr.mxu0 0.0
        %495 = vmatpush1.msra.mxu0 0.0
        %496 = vmatprep.subr.mxu0 0.0
        %497 = vmatpush1.msra.mxu0 0.0
        %498 = vmatprep.subr.mxu0 0.0
        %499 = vmatpush1.msra.mxu0 0.0
        %500 = vmatprep.subr.mxu0 0.0
        %501 = vmatpush1.msra.mxu0 0.0
        %502 = vmatprep.subr.mxu0 0.0
        %503 = vmatpush1.msra.mxu0 0.0
        %504 = vmatprep.mubr.f32.mxu0 0.0
        %505 = vmatmul.mubr.f32.gmra.mrb[0].mxu0 %v438
        %v506 = vpop.f32.mrb[0].mxu0
        %v507 = vadd.f32 0.0, %v506
        %v508 = vpop.f32.mrb[0].mxu0
        %v509 = vadd.f32 0.0, %v508
        %510 = vdwg.mxu0
        %v511 = vmul.f32 %v507, %v262
        %v512 = vmul.f32 %v509, %v264
        %v515 = vcombine.low %v511, %v512
        %517 = vst [vmem:[%s218] sm:$0xff] %v515
        %s518 = sand.u32 %s138, 1
        %s519 = scalar_lea.sflag [#allocation4], %s518
        %s520 = sand.u32 %s138, 1
        %s521 = smul.addr %s520, 8
        %s522 = scalar_lea.vmem [#allocation3], %s521
        // Predicated region
        $region41: #{tpu_custom_call.1} parent=39 // pred_check
          %p523 = pneg %p148
        $region42: #{tpu_custom_call.1} parent=39 // pred_check_branch
          %525 = sbr.rel (%p523) target = $region44
        $region43: #{tpu_custom_call.1} parent=39 // pred_region
          %s527 = ssub.s32 128, 128
          %528 = vsyncadd %s519, %s527
          %s529 = smul.addr %s20, 2
          %s530 = smul.addr %s529, 64
          %s531 = scalar_lea.hbm %s5, %s530
          %s533 = sshll.u32 %s522, 4
          %s534 = int_to_ptr.vmem [resolvable:$true] %s533
          %536 = dma.vmem_to_hbm [thread:$0]  %s534, 128, %s531, %s519
        $region44: #{tpu_custom_call.1} parent=39 // pred_fallthru
          _
      $region40: #{tpu_custom_call.1} parent=5 // pred_fallthru
        _
      %p537 = scmp.le.s32.totalorder 2, %s15
      // Predicated region
      $region45: #{tpu_custom_call.1} parent=5 // pred_check
        %p538 = pneg %p537
      $region46: #{tpu_custom_call.1} parent=5 // pred_check_branch
        %540 = sbr.rel (%p538) target = $region48
      $region47: #{tpu_custom_call.1} parent=5 // pred_region
        %s541 = ssub.s32 %s15, 2
        // Predicated region
        $region49: #{tpu_custom_call.1} parent=47 // pred_check
          %p542 = pneg %p154
        $region50: #{tpu_custom_call.1} parent=47 // pred_check_branch
          %544 = sbr.rel (%p542) target = $region52
        $region51: #{tpu_custom_call.1} parent=47 // pred_region
          %s545 = sand.u32 %s139, 1
          %s546 = scalar_lea.sflag [#allocation4], %s545
          %s547 = sand.u32 %s139, 1
          %s548 = smul.addr %s547, 8
          %s549 = scalar_lea.vmem [#allocation3], %s548
          %550 = dma.done %s546, 128
        $region52: #{tpu_custom_call.1} parent=47 // pred_fallthru
          _
      $region48: #{tpu_custom_call.1} parent=5 // pred_fallthru
        _
    $region6: #{tpu_custom_call.1} parent=1 // loop_footer
      %s19 = sadd.s32 1, %s15
    $region7: #{tpu_custom_call.1} parent=1 // loop_footer_branch
      %14 = sbr.rel target = $region3
    $region8: #{tpu_custom_call.1} parent=1 // loop_exit
      _
    %551 = vsyncpa [#allocation4], 1
    %s552 = scalar_lea.sflag [#allocation4], 1
    %553 = vsyncpa %s552, 1

</llo_original>
